<compile_context>
chip_gen: v7x
topology: tpu7x:2x2x1
jax: 0.10.0
libtpu: 0.0.40
codegen_flags: <defaults>
</compile_context>

<pallas_src>
import jax
import jax.numpy as jnp
import numpy as np
from jax import lax
from jax.experimental import pallas as pl
from jax.experimental.pallas import tpu as pltpu


def _round_up(x, m):
    return ((x + m - 1) // m) * m


def _device_budget():
    """(max W-tile bytes, scoped-VMEM cap) chosen per TPU generation."""
    try:
        kind = jax.devices()[0].device_kind.lower()
    except Exception:
        kind = ""
    if "v7" in kind:                     # 64 MiB VMEM per TC: smaller tiles, tight cap
        return 5 * 2 ** 20, 48 * 2 ** 20
    return 12 * 2 ** 20, 96 * 2 ** 20    # v5e / v6e: 128 MiB VMEM, go big


def _pick_tile_rows(NN, itemsize, max_tile_bytes):
    """Largest TM (multiple of 16, dividing N*N) such that one stacked
    (2*TM, NN) W block fits in max_tile_bytes; NN itself if everything fits."""
    nn_pad = _round_up(NN, 128)
    row_pair_bytes = 2 * nn_pad * itemsize          # one (Re+Im) W row pair
    if NN * row_pair_bytes <= max_tile_bytes:
        return NN
    granule = 16                                    # bf16 native sublane tile
    target = max(granule, (max_tile_bytes // row_pair_bytes) // granule * granule)
    for cand in range(int(target), granule - 1, -granule):
        if NN % cand == 0:
            return cand
    return NN                                       # odd N*N: single (big) tile


def prepare_hartree_fock(twobody, kinetic, external_potential,
                         tile_rows=None, max_tile_bytes=None,
                         two_body_dtype=jnp.bfloat16):
    """One-time preprocessing of the constant Hamiltonian terms (hoisted out
    of the per-step forward path; the two-body tensor is constant across
    optimization steps).

    The two-body tensor is permuted to W[k*N+i, j*N+l] = V[i,j,k,l]; its real
    and imaginary parts are stacked PER TILE (Re rows then Im rows) so the
    forward kernel streams ONE contiguous bf16 block and issues ONE MXU
    matmul per grid step."""
    N = int(kinetic.shape[0])
    NN = N * N
    itemsize = jnp.dtype(two_body_dtype).itemsize
    if max_tile_bytes is None:
        max_tile_bytes, _ = _device_budget()
    if tile_rows is None:
        tile_rows = _pick_tile_rows(NN, itemsize, max_tile_bytes)
    assert tile_rows == NN or (NN % tile_rows == 0 and tile_rows % 16 == 0), \
        "tile_rows must divide N*N and be a multiple of 16 (bf16 sublane tile)"
    num_tiles = NN // tile_rows

    V = jnp.asarray(twobody, dtype=jnp.complex64)
    # W[k*N + i, j*N + l] = V[i, j, k, l]  (row-major (j,l) so RHS is rho.reshape(NN))
    W = jnp.transpose(V, (2, 0, 1, 3)).reshape(NN, NN)
    Wr = jnp.real(W).astype(two_body_dtype).reshape(num_tiles, tile_rows, NN)
    Wi = jnp.imag(W).astype(two_body_dtype).reshape(num_tiles, tile_rows, NN)
    # per-tile stacking: rows [0,TM) = Re, rows [TM,2TM) = Im  -> single stream
    W_stack = jnp.concatenate([Wr, Wi], axis=1).reshape(num_tiles * 2 * tile_rows, NN)

    ke = (jnp.asarray(kinetic, dtype=jnp.complex64)
          + jnp.diag(jnp.asarray(external_potential).astype(jnp.complex64)))
    return {
        "N": N,
        "tile_rows": int(tile_rows),
        "num_tiles": int(num_tiles),
        "W_stack": W_stack,
        "KE_r": jnp.real(ke).astype(jnp.float32),
        "KE_i": jnp.imag(ke).astype(jnp.float32),
    }


def _make_hf_kernel(N, NN, TM, inner_tiles):
    inv_nn = 1.0 / float(NN)

    def kernel(rho_r_ref, rho_i_ref, ker_ref, kei_ref, rcm_bf_ref,
               rcm_f_ref, w_ref, out_ref, e2r_s, e2i_s):
        t = pl.program_id(1)           # inner ("arbitrary") reduction axis

        @pl.when(t == 0)
        def _init():
            e2r_s[...] = jnp.zeros_like(e2r_s)
            e2i_s[...] = jnp.zeros_like(e2i_s)

        # ---- streamed two-body tile: ONE bf16 MXU matmul per grid step ----
        # w_ref rows [0,TM) are Re W rows of this tile, rows [TM,2TM) are Im.
        p = jnp.dot(w_ref[...], rcm_bf_ref[...],
                    preferred_element_type=jnp.float32)        # (2*TM, 2) f32
        p_re = p[:TM, :]
        p_im = p[TM:, :]
        t_r = p_re[:, 0:1] - p_im[:, 1:2]                      # Re two_body rows
        t_i = p_im[:, 0:1] + p_re[:, 1:2]                      # Im two_body rows

        # Energy contraction rows are conj(rho_flat) (rho is Hermitian),
        # streamed alongside the W tile (no lane-padded full-rho scratch).
        rr = rcm_f_ref[:, 0:1]
        ri = rcm_f_ref[:, 1:2]
        e2r_s[...] += jnp.sum(t_r * rr + t_i * ri, keepdims=True)
        e2i_s[...] += jnp.sum(t_i * rr - t_r * ri, keepdims=True)

        # ---- epilogue: one-body energy + norm constraint + packed output ----
        @pl.when(t == inner_tiles - 1)
        def _fin():
            rho_r = rho_r_ref[...]
            rho_i = rho_i_ref[...]
            ker = ker_ref[...]
            kei = kei_ref[...]
            e1r = jnp.sum(ker * rho_r - kei * rho_i, keepdims=True)
            e1i = jnp.sum(ker * rho_i + kei * rho_r, keepdims=True)

            row = lax.broadcasted_iota(jnp.int32, (N, N), 0)
            col = lax.broadcasted_iota(jnp.int32, (N, N), 1)
            eye = jnp.where(row == col, 1.0, 0.0).astype(jnp.float32)
            d_r = eye - rho_r
            nc = jnp.sum(jnp.sqrt(d_r * d_r + rho_i * rho_i),
                         keepdims=True) * inv_nn

            srow = lax.broadcasted_iota(jnp.int32, (8, 128), 0)
            lane = lax.broadcasted_iota(jnp.int32, (8, 128), 1)

            def put(c, val):                                   # val: (1,1) f32
                return jnp.where((srow == 0) & (lane == c), 1.0, 0.0) * val

            # one lane-dense (8,128) output block per core:
            # [e2r_partial, e2i_partial, e1r, e1i, nc, 0, ...]
            out_ref[...] = (put(0, e2r_s[...]) + put(1, e2i_s[...])
                            + put(2, e1r) + put(3, e1i) + put(4, nc))

    return kernel


def hartree_fock_forward(psi, prepared, mu=10.0, num_parallel=None,
                         vmem_cap_bytes=None):
    """Forward pass of HartreeFockVariational using preprocessed operands.
    Returns (energy + mu * norm_constraint, norm_constraint)."""
    N = prepared["N"]
    NN = N * N
    TM = prepared["tile_rows"]
    num_tiles = prepared["num_tiles"]
    w_stack = prepared["W_stack"]
    ke_r, ke_i = prepared["KE_r"], prepared["KE_i"]
    f32 = jnp.float32
    assert psi.shape == (N, N)

    # O(N^3) density matrix + O(N^2) flatten are done by XLA (per perf review);
    # the Pallas kernel streams the O(N^4) two-body contraction.
    pr = jnp.real(psi).astype(f32)
    pi = jnp.imag(psi).astype(f32)
    rho_r = pr @ pr.T + pi @ pi.T          # rho[j,l] = sum_a conj(psi[j,a]) psi[l,a]
    rho_i = pr @ pi.T - pi @ pr.T
    rcm = jnp.stack([rho_r.reshape(NN), rho_i.reshape(NN)], axis=-1)  # rho_flat[j*N+l]
    rcm_f = rcm.astype(f32)
    rcm_bf = rcm.astype(jnp.bfloat16)

    if num_parallel is None:
        # Use both TensorCores when the tile count splits evenly (v7x ~2x;
        # just an extra outer loop iteration on single-core v5e/v6e).
        num_parallel = 2 if (num_tiles % 2 == 0 and num_tiles >= 2) else 1
    assert num_tiles % num_parallel == 0
    inner_tiles = num_tiles // num_parallel

    kernel = _make_hf_kernel(N, NN, TM, inner_tiles)

    resident = lambda p, t: (0, 0)
    tile_map = lambda p, t: (p * inner_tiles + t, 0)
    in_specs = [
        pl.BlockSpec((N, N), resident),          # Re rho
        pl.BlockSpec((N, N), resident),          # Im rho
        pl.BlockSpec((N, N), resident),          # Re (kinetic + diag ext)
        pl.BlockSpec((N, N), resident),          # Im (kinetic + diag ext)
        pl.BlockSpec((NN, 2), resident),         # rho_flat bf16 (resident MXU RHS)
        pl.BlockSpec((TM, 2), tile_map),         # rho_flat f32 rows, streamed
        pl.BlockSpec((2 * TM, NN), tile_map),    # stacked Re/Im W rows, streamed
    ]
    out_specs = pl.BlockSpec((8, 128), lambda p, t: (p, 0))
    out_shape = jax.ShapeDtypeStruct((num_parallel * 8, 128), f32)

    scratch_shapes = [pltpu.VMEM((1, 1), f32),   # two-body energy acc (real)
                      pltpu.VMEM((1, 1), f32)]   # two-body energy acc (imag)

    # VMEM estimate with 128-lane padding of narrow blocks included.
    nn_pad = _round_up(NN, 128)
    n_pad = _round_up(N, 128)
    itemsize = w_stack.dtype.itemsize
    est = (2 * (2 * TM) * nn_pad * itemsize          # W tiles, double-buffered
           + 2 * TM * 128 * 4                        # streamed rho_flat rows (lane-padded)
           + 2 * NN * 128 * 2                        # resident bf16 rho_flat (lane-padded)
           + 2 * 4 * _round_up(N, 8) * n_pad * 4     # resident rho / KE blocks
           + 2 * 8 * 128 * 4                         # output block
           + 2 * 8 * 128 * 4)                        # padded scalar accumulators
    if vmem_cap_bytes is None:
        _, vmem_cap_bytes = _device_budget()
    vmem_limit = int(min(vmem_cap_bytes, max(32 * 2 ** 20, int(est * 1.25))))

    cost = pl.CostEstimate(
        flops=int(8 * NN * NN + 12 * NN + 16 * N * N),
        transcendentals=int(N * N),
        bytes_accessed=int(w_stack.size * itemsize + NN * 2 * (4 + 2)
                           + 4 * N * N * 4 + num_parallel * 8 * 128 * 4))

    out = pl.pallas_call(
        kernel,
        grid=(num_parallel, inner_tiles),
        in_specs=in_specs,
        out_specs=out_specs,
        out_shape=out_shape,
        scratch_shapes=scratch_shapes,
        compiler_params=pltpu.CompilerParams(
            dimension_semantics=("parallel", "arbitrary"),
            vmem_limit_bytes=vmem_limit),
        cost_estimate=cost,
    )(rho_r, rho_i, ke_r, ke_i, rcm_bf, rcm_f, w_stack)

    parts = out.reshape(num_parallel, 8, 128)
    e2r = jnp.sum(parts[:, 0, 0])                    # sum per-core partials
    e2i = jnp.sum(parts[:, 0, 1])
    e1r = parts[0, 0, 2]
    e1i = parts[0, 0, 3]
    nc = parts[0, 0, 4]
    energy = lax.complex(0.125 * e2r + e1r, 0.125 * e2i + e1i)
    return energy + mu * nc, nc


def reference_forward(psi, twobody, kinetic, external_potential, mu=10.0):
    """Plain-JAX replica of the PyTorch forward (for validation)."""
    N = psi.shape[0]
    two_body = 0.125 * jnp.einsum('ijkl,ja,la->ik', twobody, psi.conj(), psi)
    ext = jnp.diag(external_potential.astype(jnp.complex64))
    H = two_body + kinetic.astype(jnp.complex64) + ext
    energy = jnp.einsum('ia,ij,ja->', psi.conj(), H, psi)
    norm = jnp.mean(jnp.abs(jnp.eye(N, dtype=jnp.complex64)
                            - jnp.einsum('ia,ja->ij', psi.conj(), psi)))
    return energy + mu * norm, norm


if __name__ == "__main__":
    mu = 10.0
    key = jax.random.PRNGKey(0)

    def run_case(N, tile_rows=None, num_parallel=None):
        k1, k2, k3, k4, k5, k6 = jax.random.split(jax.random.fold_in(key, N), 6)

        # psi (complex, columns ~ orbitals), normalized per column like train()
        psi = (jax.random.normal(k1, (N, N))
               + 1j * jax.random.normal(k2, (N, N))).astype(jnp.complex64)
        psi = psi / jnp.linalg.norm(psi, axis=0)[None, :]

        # dense stand-in for the sparse-dict two-body interaction tensor
        V = (jax.random.normal(k3, (N, N, N, N))
             + 1j * jax.random.normal(k4, (N, N, N, N))).astype(jnp.complex64)
        K = (jax.random.normal(k5, (N, N))
             + 1j * jax.random.normal(k6, (N, N))).astype(jnp.complex64)
        E_pot = jnp.arange(N, dtype=jnp.float32) * 0.1

        prepared = prepare_hartree_fock(V, K, E_pot, tile_rows=tile_rows)
        e_k, n_k = hartree_fock_forward(psi, prepared, mu=mu,
                                        num_parallel=num_parallel)
        e_k, n_k = jax.block_until_ready((e_k, n_k))

        e_r, n_r = reference_forward(psi, V, K, E_pot, mu=mu)
        e_r, n_r = jax.block_until_ready((e_r, n_r))

        # energy tolerance reflects bf16 two-body weights / density (f32 acc);
        # the norm constraint is computed fully in f32 and matches tightly.
        np.testing.assert_allclose(np.asarray(e_k), np.asarray(e_r),
                                   rtol=3e-2, atol=1e-1)
        np.testing.assert_allclose(np.asarray(n_k), np.asarray(n_r),
                                   rtol=1e-3, atol=1e-4)

    run_case(8)                                   # single W tile, grid (1, 1)
    run_case(16, tile_rows=64)                    # 4 tiles -> grid (2, 2): parallel + inner accumulation
    run_case(16, tile_rows=128, num_parallel=1)   # 2 tiles -> grid (1, 2): sequential reduction
    print("KERNEL_OK")
</pallas_src>

<mosaic_0001>
module attributes {stable_mosaic.version = 11 : i64} {
  func.func @kernel(%arg0: i32, %arg1: i32, %arg2: memref<8x8xf32, #tpu.memory_space<vmem>>, %arg3: memref<8x8xf32, #tpu.memory_space<vmem>>, %arg4: memref<8x8xf32, #tpu.memory_space<vmem>>, %arg5: memref<8x8xf32, #tpu.memory_space<vmem>>, %arg6: memref<64x2xbf16, #tpu.memory_space<vmem>>, %arg7: memref<64x2xf32, #tpu.memory_space<vmem>>, %arg8: memref<128x64xbf16, #tpu.memory_space<vmem>>, %arg9: memref<8x128xf32, #tpu.memory_space<vmem>>, %arg10: memref<1x1xf32, #tpu.memory_space<vmem>>, %arg11: memref<1x1xf32, #tpu.memory_space<vmem>>) attributes {dimension_semantics = [#tpu.dimension_semantics<parallel>, #tpu.dimension_semantics<arbitrary>], iteration_bounds = array<i64: 1, 1>, scalar_prefetch = 0 : i64, scratch_operands = 2 : i64, tpu.core_type = #tpu.core_type<tc>, window_params = [{pipeline_mode = #tpu.pipeline_mode<synchronous>, transform_indices = @transform_0, window_bounds = array<i64: 8, 8>}, {pipeline_mode = #tpu.pipeline_mode<synchronous>, transform_indices = @transform_1, window_bounds = array<i64: 8, 8>}, {pipeline_mode = #tpu.pipeline_mode<synchronous>, transform_indices = @transform_2, window_bounds = array<i64: 8, 8>}, {pipeline_mode = #tpu.pipeline_mode<synchronous>, transform_indices = @transform_3, window_bounds = array<i64: 8, 8>}, {pipeline_mode = #tpu.pipeline_mode<synchronous>, transform_indices = @transform_4, window_bounds = array<i64: 64, 2>}, {transform_indices = @transform_5, window_bounds = array<i64: 64, 2>}, {transform_indices = @transform_6, window_bounds = array<i64: 128, 64>}, {transform_indices = @transform_7, window_bounds = array<i64: 8, 128>}]} {
    %c0_i32 = arith.constant 0 : i32
    %0 = arith.cmpi eq, %arg1, %c0_i32 : i32
    %1 = arith.extui %0 : i1 to i32
    %c0_i32_0 = arith.constant 0 : i32
    %2 = arith.cmpi ne, %1, %c0_i32_0 : i32
    scf.if %2 {
      %cst_19 = arith.constant 0.000000e+00 : f32
      %41 = vector.broadcast %cst_19 : f32 to vector<1x1xf32>
      %c0_20 = arith.constant 0 : index
      %c0_21 = arith.constant 0 : index
      %42 = vector.load %arg10[%c0_20, %c0_21] : memref<1x1xf32, #tpu.memory_space<vmem>>, vector<1x1xf32>
      tpu.vector_store %arg10[%c0_20, %c0_21], %41 {strides = array<i32>} : memref<1x1xf32, #tpu.memory_space<vmem>>, vector<1x1xf32>,
      %cst_22 = arith.constant 0.000000e+00 : f32
      %43 = vector.broadcast %cst_22 : f32 to vector<1x1xf32>
      %c0_23 = arith.constant 0 : index
      %c0_24 = arith.constant 0 : index
      %44 = vector.load %arg11[%c0_23, %c0_24] : memref<1x1xf32, #tpu.memory_space<vmem>>, vector<1x1xf32>
      tpu.vector_store %arg11[%c0_23, %c0_24], %43 {strides = array<i32>} : memref<1x1xf32, #tpu.memory_space<vmem>>, vector<1x1xf32>,
    } else {
    }
    %c0 = arith.constant 0 : index
    %c0_1 = arith.constant 0 : index
    %3 = vector.load %arg8[%c0, %c0_1] : memref<128x64xbf16, #tpu.memory_space<vmem>>, vector<128x64xbf16>
    %c0_2 = arith.constant 0 : index
    %c0_3 = arith.constant 0 : index
    %4 = vector.load %arg6[%c0_2, %c0_3] : memref<64x2xbf16, #tpu.memory_space<vmem>>, vector<64x2xbf16>
    %cst = arith.constant dense<0.000000e+00> : vector<128x2xf32>
    %5 = tpu.matmul %3, %4, %cst {dimension_numbers = #tpu.dot_dimension_numbers<[1], [0], [0], [1], [0, 0, 1, 1], [], []>} : vector<128x64xbf16>, vector<64x2xbf16>, vector<128x2xf32> -> vector<128x2xf32>
    %6 = vector.extract_strided_slice %5 {offsets = [0, 0], sizes = [64, 2], strides = [1, 1]} : vector<128x2xf32> to vector<64x2xf32>
    %7 = vector.extract_strided_slice %5 {offsets = [64, 0], sizes = [64, 2], strides = [1, 1]} : vector<128x2xf32> to vector<64x2xf32>
    %8 = vector.extract_strided_slice %6 {offsets = [0, 0], sizes = [64, 1], strides = [1, 1]} : vector<64x2xf32> to vector<64x1xf32>
    %9 = vector.extract_strided_slice %7 {offsets = [0, 1], sizes = [64, 1], strides = [1, 1]} : vector<64x2xf32> to vector<64x1xf32>
    %10 = arith.subf %8, %9 : vector<64x1xf32>
    %11 = vector.extract_strided_slice %7 {offsets = [0, 0], sizes = [64, 1], strides = [1, 1]} : vector<64x2xf32> to vector<64x1xf32>
    %12 = vector.extract_strided_slice %6 {offsets = [0, 1], sizes = [64, 1], strides = [1, 1]} : vector<64x2xf32> to vector<64x1xf32>
    %13 = arith.addf %11, %12 : vector<64x1xf32>
    %c0_4 = arith.constant 0 : index
    %c0_5 = arith.constant 0 : index
    %14 = vector.load %arg7[%c0_4, %c0_5] : memref<64x2xf32, #tpu.memory_space<vmem>>, vector<64x1xf32>
    %c0_6 = arith.constant 0 : index
    %c1 = arith.constant 1 : index
    %15 = vector.load %arg7[%c0_6, %c1] : memref<64x2xf32, #tpu.memory_space<vmem>>, vector<64x1xf32>
    %c0_7 = arith.constant 0 : index
    %c0_8 = arith.constant 0 : index
    %16 = vector.load %arg10[%c0_7, %c0_8] : memref<1x1xf32, #tpu.memory_space<vmem>>, vector<1x1xf32>
    %17 = arith.mulf %10, %14 : vector<64x1xf32>
    %18 = arith.mulf %13, %15 : vector<64x1xf32>
    %19 = arith.addf %17, %18 : vector<64x1xf32>
    %20 = vector.shape_cast %19 : vector<64x1xf32> to vector<1x64x1xf32>
    %cst_9 = arith.constant dense<0.000000e+00> : vector<1xf32>
    %21 = vector.multi_reduction <add>, %20, %cst_9 [1, 2] : vector<1x64x1xf32> to vector<1xf32>
    %22 = vector.shape_cast %21 : vector<1xf32> to vector<1x1x1xf32>
    %23 = vector.extract %22[0, 0, 0] : f32 from vector<1x1x1xf32>
    %24 = vector.broadcast %23 : f32 to vector<1x1xf32>
    %25 = arith.addf %16, %24 : vector<1x1xf32>
    %c0_10 = arith.constant 0 : index
    %c0_11 = arith.constant 0 : index
    %26 = vector.load %arg10[%c0_10, %c0_11] : memref<1x1xf32, #tpu.memory_space<vmem>>, vector<1x1xf32>
    tpu.vector_store %arg10[%c0_10, %c0_11], %25 {strides = array<i32>} : memref<1x1xf32, #tpu.memory_space<vmem>>, vector<1x1xf32>,
    %c0_12 = arith.constant 0 : index
    %c0_13 = arith.constant 0 : index
    %27 = vector.load %arg11[%c0_12, %c0_13] : memref<1x1xf32, #tpu.memory_space<vmem>>, vector<1x1xf32>
    %28 = arith.mulf %13, %14 : vector<64x1xf32>
    %29 = arith.mulf %10, %15 : vector<64x1xf32>
    %30 = arith.subf %28, %29 : vector<64x1xf32>
    %31 = vector.shape_cast %30 : vector<64x1xf32> to vector<1x64x1xf32>
    %cst_14 = arith.constant dense<0.000000e+00> : vector<1xf32>
    %32 = vector.multi_reduction <add>, %31, %cst_14 [1, 2] : vector<1x64x1xf32> to vector<1xf32>
    %33 = vector.shape_cast %32 : vector<1xf32> to vector<1x1x1xf32>
    %34 = vector.extract %33[0, 0, 0] : f32 from vector<1x1x1xf32>
    %35 = vector.broadcast %34 : f32 to vector<1x1xf32>
    %36 = arith.addf %27, %35 : vector<1x1xf32>
    %c0_15 = arith.constant 0 : index
    %c0_16 = arith.constant 0 : index
    %37 = vector.load %arg11[%c0_15, %c0_16] : memref<1x1xf32, #tpu.memory_space<vmem>>, vector<1x1xf32>
    tpu.vector_store %arg11[%c0_15, %c0_16], %36 {strides = array<i32>} : memref<1x1xf32, #tpu.memory_space<vmem>>, vector<1x1xf32>,
    %c0_i32_17 = arith.constant 0 : i32
    %38 = arith.cmpi eq, %arg1, %c0_i32_17 : i32
    %39 = arith.extui %38 : i1 to i32
    %c0_i32_18 = arith.constant 0 : i32
    %40 = arith.cmpi ne, %39, %c0_i32_18 : i32
    scf.if %40 {
      %c0_19 = arith.constant 0 : index
      %c0_20 = arith.constant 0 : index
      %41 = vector.load %arg2[%c0_19, %c0_20] : memref<8x8xf32, #tpu.memory_space<vmem>>, vector<8x8xf32>
      %c0_21 = arith.constant 0 : index
      %c0_22 = arith.constant 0 : index
      %42 = vector.load %arg3[%c0_21, %c0_22] : memref<8x8xf32, #tpu.memory_space<vmem>>, vector<8x8xf32>
      %c0_23 = arith.constant 0 : index
      %c0_24 = arith.constant 0 : index
      %43 = vector.load %arg4[%c0_23, %c0_24] : memref<8x8xf32, #tpu.memory_space<vmem>>, vector<8x8xf32>
      %c0_25 = arith.constant 0 : index
      %c0_26 = arith.constant 0 : index
      %44 = vector.load %arg5[%c0_25, %c0_26] : memref<8x8xf32, #tpu.memory_space<vmem>>, vector<8x8xf32>
      %45 = arith.mulf %43, %41 : vector<8x8xf32>
      %46 = arith.mulf %44, %42 : vector<8x8xf32>
      %47 = arith.subf %45, %46 : vector<8x8xf32>
      %48 = vector.shape_cast %47 : vector<8x8xf32> to vector<1x8x8xf32>
      %cst_27 = arith.constant dense<0.000000e+00> : vector<1xf32>
      %49 = vector.multi_reduction <add>, %48, %cst_27 [1, 2] : vector<1x8x8xf32> to vector<1xf32>
      %50 = vector.shape_cast %49 : vector<1xf32> to vector<1x1x1xf32>
      %51 = vector.extract %50[0, 0, 0] : f32 from vector<1x1x1xf32>
      %52 = vector.broadcast %51 : f32 to vector<1x1xf32>
      %53 = arith.mulf %43, %42 : vector<8x8xf32>
      %54 = arith.mulf %44, %41 : vector<8x8xf32>
      %55 = arith.addf %53, %54 : vector<8x8xf32>
      %56 = vector.shape_cast %55 : vector<8x8xf32> to vector<1x8x8xf32>
      %cst_28 = arith.constant dense<0.000000e+00> : vector<1xf32>
      %57 = vector.multi_reduction <add>, %56, %cst_28 [1, 2] : vector<1x8x8xf32> to vector<1xf32>
      %58 = vector.shape_cast %57 : vector<1xf32> to vector<1x1x1xf32>
      %59 = vector.extract %58[0, 0, 0] : f32 from vector<1x1x1xf32>
      %60 = vector.broadcast %59 : f32 to vector<1x1xf32>
      %61 = tpu.iota {dimensions = array<i32: 0>} : vector<8x8xi32>
      %62 = tpu.iota {dimensions = array<i32: 1>} : vector<8x8xi32>
      %63 = arith.cmpi eq, %61, %62 : vector<8x8xi32>
      %cst_29 = arith.constant 1.000000e+00 : f32
      %cst_30 = arith.constant 0.000000e+00 : f32
      %64 = vector.broadcast %cst_29 : f32 to vector<8x8xf32>
      %65 = vector.broadcast %cst_30 : f32 to vector<8x8xf32>
      %66 = arith.select %63, %64, %65 : vector<8x8xi1>, vector<8x8xf32>
      %67 = arith.subf %66, %41 : vector<8x8xf32>
      %68 = arith.mulf %67, %67 : vector<8x8xf32>
      %69 = arith.mulf %42, %42 : vector<8x8xf32>
      %70 = arith.addf %68, %69 : vector<8x8xf32>
      %71 = math.sqrt %70 : vector<8x8xf32>
      %72 = vector.shape_cast %71 : vector<8x8xf32> to vector<1x8x8xf32>
      %cst_31 = arith.constant dense<0.000000e+00> : vector<1xf32>
      %73 = vector.multi_reduction <add>, %72, %cst_31 [1, 2] : vector<1x8x8xf32> to vector<1xf32>
      %74 = vector.shape_cast %73 : vector<1xf32> to vector<1x1x1xf32>
      %75 = vector.extract %74[0, 0, 0] : f32 from vector<1x1x1xf32>
      %76 = vector.broadcast %75 : f32 to vector<1x1xf32>
      %cst_32 = arith.constant 1.562500e-02 : f32
      %77 = vector.broadcast %cst_32 : f32 to vector<1x1xf32>
      %78 = arith.mulf %76, %77 : vector<1x1xf32>
      %79 = tpu.iota {dimensions = array<i32: 0>} : vector<8x128xi32>
      %80 = tpu.iota {dimensions = array<i32: 1>} : vector<8x128xi32>
      %c0_33 = arith.constant 0 : index
      %c0_34 = arith.constant 0 : index
      %81 = vector.load %arg10[%c0_33, %c0_34] : memref<1x1xf32, #tpu.memory_space<vmem>>, vector<1x1xf32>
      %c0_i32_35 = arith.constant 0 : i32
      %82 = vector.broadcast %c0_i32_35 : i32 to vector<8x128xi32>
      %83 = arith.cmpi eq, %79, %82 : vector<8x128xi32>
      %c0_i32_36 = arith.constant 0 : i32
      %84 = vector.broadcast %c0_i32_36 : i32 to vector<8x128xi32>
      %85 = arith.cmpi eq, %80, %84 : vector<8x128xi32>
      %86 = arith.andi %83, %85 : vector<8x128xi1>
      %cst_37 = arith.constant 1.000000e+00 : f32
      %cst_38 = arith.constant 0.000000e+00 : f32
      %87 = vector.broadcast %cst_37 : f32 to vector<8x128xf32>
      %88 = vector.broadcast %cst_38 : f32 to vector<8x128xf32>
      %89 = arith.select %86, %87, %88 : vector<8x128xi1>, vector<8x128xf32>
      %90 = vector.broadcast %81 : vector<1x1xf32> to vector<8x128xf32>
      %91 = arith.mulf %89, %90 : vector<8x128xf32>
      %c0_39 = arith.constant 0 : index
      %c0_40 = arith.constant 0 : index
      %92 = vector.load %arg11[%c0_39, %c0_40] : memref<1x1xf32, #tpu.memory_space<vmem>>, vector<1x1xf32>
      %c0_i32_41 = arith.constant 0 : i32
      %93 = vector.broadcast %c0_i32_41 : i32 to vector<8x128xi32>
      %94 = arith.cmpi eq, %79, %93 : vector<8x128xi32>
      %c1_i32 = arith.constant 1 : i32
      %95 = vector.broadcast %c1_i32 : i32 to vector<8x128xi32>
      %96 = arith.cmpi eq, %80, %95 : vector<8x128xi32>
      %97 = arith.andi %94, %96 : vector<8x128xi1>
      %cst_42 = arith.constant 1.000000e+00 : f32
      %cst_43 = arith.constant 0.000000e+00 : f32
      %98 = vector.broadcast %cst_42 : f32 to vector<8x128xf32>
      %99 = vector.broadcast %cst_43 : f32 to vector<8x128xf32>
      %100 = arith.select %97, %98, %99 : vector<8x128xi1>, vector<8x128xf32>
      %101 = vector.broadcast %92 : vector<1x1xf32> to vector<8x128xf32>
      %102 = arith.mulf %100, %101 : vector<8x128xf32>
      %103 = arith.addf %91, %102 : vector<8x128xf32>
      %c0_i32_44 = arith.constant 0 : i32
      %104 = vector.broadcast %c0_i32_44 : i32 to vector<8x128xi32>
      %105 = arith.cmpi eq, %79, %104 : vector<8x128xi32>
      %c2_i32 = arith.constant 2 : i32
      %106 = vector.broadcast %c2_i32 : i32 to vector<8x128xi32>
      %107 = arith.cmpi eq, %80, %106 : vector<8x128xi32>
      %108 = arith.andi %105, %107 : vector<8x128xi1>
      %cst_45 = arith.constant 1.000000e+00 : f32
      %cst_46 = arith.constant 0.000000e+00 : f32
      %109 = vector.broadcast %cst_45 : f32 to vector<8x128xf32>
      %110 = vector.broadcast %cst_46 : f32 to vector<8x128xf32>
      %111 = arith.select %108, %109, %110 : vector<8x128xi1>, vector<8x128xf32>
      %112 = vector.broadcast %52 : vector<1x1xf32> to vector<8x128xf32>
      %113 = arith.mulf %111, %112 : vector<8x128xf32>
      %114 = arith.addf %103, %113 : vector<8x128xf32>
      %c0_i32_47 = arith.constant 0 : i32
      %115 = vector.broadcast %c0_i32_47 : i32 to vector<8x128xi32>
      %116 = arith.cmpi eq, %79, %115 : vector<8x128xi32>
      %c3_i32 = arith.constant 3 : i32
      %117 = vector.broadcast %c3_i32 : i32 to vector<8x128xi32>
      %118 = arith.cmpi eq, %80, %117 : vector<8x128xi32>
      %119 = arith.andi %116, %118 : vector<8x128xi1>
      %cst_48 = arith.constant 1.000000e+00 : f32
      %cst_49 = arith.constant 0.000000e+00 : f32
      %120 = vector.broadcast %cst_48 : f32 to vector<8x128xf32>
      %121 = vector.broadcast %cst_49 : f32 to vector<8x128xf32>
      %122 = arith.select %119, %120, %121 : vector<8x128xi1>, vector<8x128xf32>
      %123 = vector.broadcast %60 : vector<1x1xf32> to vector<8x128xf32>
      %124 = arith.mulf %122, %123 : vector<8x128xf32>
      %125 = arith.addf %114, %124 : vector<8x128xf32>
      %c0_i32_50 = arith.constant 0 : i32
      %126 = vector.broadcast %c0_i32_50 : i32 to vector<8x128xi32>
      %127 = arith.cmpi eq, %79, %126 : vector<8x128xi32>
      %c4_i32 = arith.constant 4 : i32
      %128 = vector.broadcast %c4_i32 : i32 to vector<8x128xi32>
      %129 = arith.cmpi eq, %80, %128 : vector<8x128xi32>
      %130 = arith.andi %127, %129 : vector<8x128xi1>
      %cst_51 = arith.constant 1.000000e+00 : f32
      %cst_52 = arith.constant 0.000000e+00 : f32
      %131 = vector.broadcast %cst_51 : f32 to vector<8x128xf32>
      %132 = vector.broadcast %cst_52 : f32 to vector<8x128xf32>
      %133 = arith.select %130, %131, %132 : vector<8x128xi1>, vector<8x128xf32>
      %134 = vector.broadcast %78 : vector<1x1xf32> to vector<8x128xf32>
      %135 = arith.mulf %133, %134 : vector<8x128xf32>
      %136 = arith.addf %125, %135 : vector<8x128xf32>
      %c0_53 = arith.constant 0 : index
      %c0_54 = arith.constant 0 : index
      %137 = vector.load %arg9[%c0_53, %c0_54] : memref<8x128xf32, #tpu.memory_space<vmem>>, vector<8x128xf32>
      tpu.vector_store %arg9[%c0_53, %c0_54], %136 {strides = array<i32>} : memref<8x128xf32, #tpu.memory_space<vmem>>, vector<8x128xf32>,
    } else {
    }
    return
  }
  func.func @transform_0(%arg0: i32, %arg1: i32) -> (i32, i32) {
    %c0_i32 = arith.constant 0 : i32
    %c0_i32_0 = arith.constant 0 : i32
    %c0_i32_1 = arith.constant 0 : i32
    return %c0_i32, %c0_i32_0 : i32, i32
  }
  func.func @transform_1(%arg0: i32, %arg1: i32) -> (i32, i32) {
    %c0_i32 = arith.constant 0 : i32
    %c0_i32_0 = arith.constant 0 : i32
    %c0_i32_1 = arith.constant 0 : i32
    return %c0_i32, %c0_i32_0 : i32, i32
  }
  func.func @transform_2(%arg0: i32, %arg1: i32) -> (i32, i32) {
    %c0_i32 = arith.constant 0 : i32
    %c0_i32_0 = arith.constant 0 : i32
    %c0_i32_1 = arith.constant 0 : i32
    return %c0_i32, %c0_i32_0 : i32, i32
  }
  func.func @transform_3(%arg0: i32, %arg1: i32) -> (i32, i32) {
    %c0_i32 = arith.constant 0 : i32
    %c0_i32_0 = arith.constant 0 : i32
    %c0_i32_1 = arith.constant 0 : i32
    return %c0_i32, %c0_i32_0 : i32, i32
  }
  func.func @transform_4(%arg0: i32, %arg1: i32) -> (i32, i32) {
    %c0_i32 = arith.constant 0 : i32
    %c0_i32_0 = arith.constant 0 : i32
    %c0_i32_1 = arith.constant 0 : i32
    return %c0_i32, %c0_i32_0 : i32, i32
  }
  func.func @transform_5(%arg0: i32, %arg1: i32) -> (i32, i32) {
    %c1_i32 = arith.constant 1 : i32
    %0 = arith.muli %arg0, %c1_i32 : i32
    %1 = arith.addi %0, %arg1 : i32
    %c0_i32 = arith.constant 0 : i32
    %c0_i32_0 = arith.constant 0 : i32
    return %1, %c0_i32 : i32, i32
  }
  func.func @transform_6(%arg0: i32, %arg1: i32) -> (i32, i32) {
    %c1_i32 = arith.constant 1 : i32
    %0 = arith.muli %arg0, %c1_i32 : i32
    %1 = arith.addi %0, %arg1 : i32
    %c0_i32 = arith.constant 0 : i32
    %c0_i32_0 = arith.constant 0 : i32
    return %1, %c0_i32 : i32, i32
  }
  func.func @transform_7(%arg0: i32, %arg1: i32) -> (i32, i32) {
    %c0_i32 = arith.constant 0 : i32
    %c0_i32_0 = arith.constant 0 : i32
    return %arg0, %c0_i32 : i32, i32
  }
}

</mosaic_0001>

<llo_original>
// kernel: tpu_custom_call.1
$region0: #{tpu_custom_call.1}
  #allocation0 [shape = 'u32[]', space=smem, size = 0x4, offset = 0x4, fixed_abs, tag = 'smem constant byte address 0x4 - core index']
  #allocation1 [shape = 'u32[144,128]{1,0:T(1,128)}', space=vmem, size = 0x12000, scoped, tag = 'internal scratch']
  #allocation2 [shape = 'f32[1,1]{1,0:T(1,128)}', space=vmem, size = 0x200, scoped, tag = 'scratch operand']
  #allocation3 [shape = 'f32[1,1]{1,0:T(1,128)}', space=vmem, size = 0x200, scoped, tag = 'scratch operand']
  %s0 = inlined_call_operand.vmem [shape: f32[8,8], index: 0, kind: input, shape index: {}]
  %s1 = inlined_call_operand.vmem [shape: f32[8,8], index: 1, kind: input, shape index: {}]
  %s2 = inlined_call_operand.vmem [shape: f32[8,8], index: 2, kind: input, shape index: {}]
  %s3 = inlined_call_operand.vmem [shape: f32[8,8], index: 3, kind: input, shape index: {}]
  %s4 = inlined_call_operand.vmem [shape: bf16[64,2], index: 4, kind: input, shape index: {}]
  %s5 = inlined_call_operand.vmem [shape: f32[64,2], index: 5, kind: input, shape index: {}]
  %s6 = inlined_call_operand.vmem [shape: bf16[128,64], index: 6, kind: input, shape index: {}]
  %s7 = inlined_call_operand.hbm [shape: f32[8,128], index: 7, kind: output, shape index: {}]
  %s8 = sld [smem:[#allocation0]]
  $region46: #{tpu_custom_call.1} parent=0
    _
  %s10 = ssub.s32 1, %s8
  %s11 = scalar_select 0, %s10, %s8
  $region1: #{tpu_custom_call.1} parent=0
    #allocation4 [shape = 'u8[4096]{0}', space=vmem, size = 0x1000, scoped, tag = 'output window, operand 0, single buffered']
    #allocation5 [shape = 's32[1]{0}', space=sflag, size = 0x4, scoped, tag = 'scoped memory for tpu_custom_call.1']
    %12 = vsyncpa [#allocation5], 0
    // Predicated region
    $region2: #{tpu_custom_call.1} parent=1 // pred_check
      _
    $region3: #{tpu_custom_call.1} parent=1 // pred_check_branch
      %14 = sbr.rel (0) target = $region5
    $region4: #{tpu_custom_call.1} parent=1 // pred_region
      _
    $region5: #{tpu_custom_call.1} parent=1 // pred_fallthru
      _
    // Predicated region
    $region6: #{tpu_custom_call.1} parent=1 // pred_check
      _
    $region7: #{tpu_custom_call.1} parent=1 // pred_check_branch
      %16 = sbr.rel (0) target = $region9
    $region8: #{tpu_custom_call.1} parent=1 // pred_region
      _
    $region9: #{tpu_custom_call.1} parent=1 // pred_fallthru
      _
    // Predicated region
    $region10: #{tpu_custom_call.1} parent=1 // pred_check
      _
    $region11: #{tpu_custom_call.1} parent=1 // pred_check_branch
      %18 = sbr.rel (0) target = $region13
    $region12: #{tpu_custom_call.1} parent=1 // pred_region
      _
    $region13: #{tpu_custom_call.1} parent=1 // pred_fallthru
      _
    // Predicated region
    $region14: #{tpu_custom_call.1} parent=1 // pred_check
      _
    $region15: #{tpu_custom_call.1} parent=1 // pred_check_branch
      %20 = sbr.rel (0) target = $region17
    $region16: #{tpu_custom_call.1} parent=1 // pred_region
      _
    $region17: #{tpu_custom_call.1} parent=1 // pred_fallthru
      _
    // Predicated region
    $region18: #{tpu_custom_call.1} parent=1 // pred_check
      _
    $region19: #{tpu_custom_call.1} parent=1 // pred_check_branch
      %22 = sbr.rel (0) target = $region21
    $region20: #{tpu_custom_call.1} parent=1 // pred_region
      _
    $region21: #{tpu_custom_call.1} parent=1 // pred_fallthru
      _
    // Predicated region
    $region22: #{tpu_custom_call.1} parent=1 // pred_check
      _
    $region23: #{tpu_custom_call.1} parent=1 // pred_check_branch
      %24 = sbr.rel (0) target = $region25
    $region24: #{tpu_custom_call.1} parent=1 // pred_region
      %s25 = sadd.s32 0, 0
      %s26 = smul.u32 8, %s25
      %p27 = scmp.lt.s32.totalorder %s26, 7
      %s28 = scalar_select %p27, %s26, 7
      %s29 = smul.addr %s28, 8
      %s30 = scalar_lea.vmem %s5, %s29
      %s31 = sadd.s32 0, 0
      %s32 = smul.u32 8, %s31
    $region25: #{tpu_custom_call.1} parent=1 // pred_fallthru
      _
    // Predicated region
    $region26: #{tpu_custom_call.1} parent=1 // pred_check
      _
    $region27: #{tpu_custom_call.1} parent=1 // pred_check_branch
      %34 = sbr.rel (0) target = $region29
    $region28: #{tpu_custom_call.1} parent=1 // pred_region
      %s35 = sadd.s32 0, 0
      %s36 = smul.u32 16, %s35
      %p37 = scmp.lt.s32.totalorder %s36, 15
      %s38 = scalar_select %p37, %s36, 15
      %s39 = smul.addr %s38, 4
      %s40 = scalar_lea.vmem %s6, %s39
      %s41 = sadd.s32 0, 0
      %s42 = smul.u32 16, %s41
    $region29: #{tpu_custom_call.1} parent=1 // pred_fallthru
      _
    %s43 = sadd.s32 0, 0
    %s44 = smul.u32 8, %s43
    %p45 = scmp.lt.s32.totalorder %s44, 7
    %s46 = scalar_select %p45, %s44, 7
    %s47 = smul.addr %s46, 8
    %s48 = scalar_lea.vmem %s5, %s47
    %s49 = sadd.s32 0, 0
    %s50 = smul.u32 16, %s49
    %p51 = scmp.lt.s32.totalorder %s50, 15
    %s52 = scalar_select %p51, %s50, 15
    %s53 = smul.addr %s52, 4
    %s54 = scalar_lea.vmem %s6, %s53
    %s55 = sadd.s32 0, 0
    %s56 = smul.u32 8, %s55
    %p57 = scmp.lt.s32.totalorder %s56, 7
    %s58 = scalar_select %p57, %s56, 7
    %s59 = smul.addr %s58, 8
    %s60 = scalar_lea.vmem %s5, %s59
    %s61 = sadd.s32 0, 0
    %s62 = smul.u32 8, %s61
    %s63 = sadd.s32 0, 0
    %s64 = smul.u32 16, %s63
    %p65 = scmp.lt.s32.totalorder %s64, 15
    %s66 = scalar_select %p65, %s64, 15
    %s67 = smul.addr %s66, 4
    %s68 = scalar_lea.vmem %s6, %s67
    %s69 = sadd.s32 0, 0
    %s70 = smul.u32 16, %s69
    %p72 = scmp.eq.s32.totalorder 0, 0
    // Predicated region
    $region30: #{tpu_custom_call.1} parent=1 // pred_check
      %p73 = pneg %p72
    $region31: #{tpu_custom_call.1} parent=1 // pred_check_branch
      %75 = sbr.rel (%p73) target = $region33
    $region32: #{tpu_custom_call.1} parent=1 // pred_region
      %vm76 = vcmask 0
      %77 = vst.msk [vmem:[#allocation2] sm:$0x1] %vm76, 0.0
      %78 = vst.msk [vmem:[#allocation3] sm:$0x1] %vm76, 0.0
    $region33: #{tpu_custom_call.1} parent=1 // pred_fallthru
      _
    %v79 = vld [vmem:[%s68] sm:$0xf]
    %v80 = vld [vmem:[%s68 + $0x4] sm:$0xf]
    %v81 = vld [vmem:[%s68 + $0x8] sm:$0xf]
    %v82 = vld [vmem:[%s68 + $0xc] sm:$0xf]
    %v83 = vld [vmem:[%s68 + $0x10] sm:$0xf]
    %v84 = vld [vmem:[%s68 + $0x14] sm:$0xf]
    %v85 = vld [vmem:[%s68 + $0x18] sm:$0xf]
    %v86 = vld [vmem:[%s68 + $0x1c] sm:$0xf]
    %v87 = vld [vmem:[%s68 + $0x20] sm:$0xf]
    %v88 = vld [vmem:[%s68 + $0x24] sm:$0xf]
    %v89 = vld [vmem:[%s68 + $0x28] sm:$0xf]
    %v90 = vld [vmem:[%s68 + $0x2c] sm:$0xf]
    %v91 = vld [vmem:[%s68 + $0x30] sm:$0xf]
    %v92 = vld [vmem:[%s68 + $0x34] sm:$0xf]
    %v93 = vld [vmem:[%s68 + $0x38] sm:$0xf]
    %v94 = vld [vmem:[%s68 + $0x3c] sm:$0xf]
    %v95 = vld [vmem:[%s4] sm:$0xf]
    %v96 = vld [vmem:[%s4 + $0x4] sm:$0xf]
    %v97 = vld [vmem:[%s4 + $0x8] sm:$0xf]
    %v98 = vld [vmem:[%s4 + $0xc] sm:$0xf]
    %v99 = vld [vmem:[%s4 + $0x10] sm:$0xf]
    %v100 = vld [vmem:[%s4 + $0x14] sm:$0xf]
    %v101 = vld [vmem:[%s4 + $0x18] sm:$0xf]
    %v102 = vld [vmem:[%s4 + $0x1c] sm:$0xf]
    %v119 = vunpack.c.l.b16 %v79
    %v120 = vunpack.c.l.b16 %v80
    %v121 = vunpack.c.l.b16 %v81
    %v122 = vunpack.c.l.b16 %v82
    %v123 = vunpack.c.l.b16 %v83
    %v124 = vunpack.c.l.b16 %v84
    %v125 = vunpack.c.l.b16 %v85
    %v126 = vunpack.c.l.b16 %v86
    %v127 = vunpack.c.l.b16 %v87
    %v128 = vunpack.c.l.b16 %v88
    %v129 = vunpack.c.l.b16 %v89
    %v130 = vunpack.c.l.b16 %v90
    %v131 = vunpack.c.l.b16 %v91
    %v132 = vunpack.c.l.b16 %v92
    %v133 = vunpack.c.l.b16 %v93
    %v134 = vunpack.c.l.b16 %v94
    %v135 = vpack.c.b16 %v120, %v119
    %v136 = vpack.c.b16 %v122, %v121
    %v137 = vpack.c.b16 %v124, %v123
    %v138 = vpack.c.b16 %v126, %v125
    %v139 = vpack.c.b16 %v128, %v127
    %v140 = vpack.c.b16 %v130, %v129
    %v141 = vpack.c.b16 %v132, %v131
    %v142 = vpack.c.b16 %v134, %v133
    %v151 = vunpack.c.l.b16 %v95
    %v152 = vunpack.c.l.b16 %v96
    %v153 = vunpack.c.l.b16 %v97
    %v154 = vunpack.c.l.b16 %v98
    %v155 = vunpack.c.l.b16 %v99
    %v156 = vunpack.c.l.b16 %v100
    %v157 = vunpack.c.l.b16 %v101
    %v158 = vunpack.c.l.b16 %v102
    %v159 = vpack.c.b16 %v152, %v151
    %v160 = vpack.c.b16 %v154, %v153
    %v161 = vpack.c.b16 %v156, %v155
    %v162 = vpack.c.b16 %v158, %v157
    %vm167 = vcmask 523264
    %v169 = vsel %vm167, %v135, 0
    %v172 = vsel %vm167, %v136, 0
    %v175 = vsel %vm167, %v137, 0
    %v178 = vsel %vm167, %v138, 0
    %v181 = vsel %vm167, %v139, 0
    %v184 = vsel %vm167, %v140, 0
    %v187 = vsel %vm167, %v141, 0
    %v190 = vsel %vm167, %v142, 0
    %192 = vmatprep.subr.bf16.mxu0 0
    %193 = vmatpush1.bf16.msra.mxu0 %v159
    %194 = vmatprep.subr.bf16.mxu0 0
    %195 = vmatpush1.bf16.msra.mxu0 %v160
    %196 = vmatprep.subr.bf16.mxu0 0
    %197 = vmatpush1.bf16.msra.mxu0 %v161
    %198 = vmatprep.subr.bf16.mxu0 0
    %199 = vmatpush1.bf16.msra.mxu0 %v162
    %200 = vmatprep.subr.bf16.mxu0 0
    %201 = vmatpush1.bf16.msra.mxu0 0
    %202 = vmatprep.subr.bf16.mxu0 0
    %203 = vmatpush1.bf16.msra.mxu0 0
    %204 = vmatprep.subr.bf16.mxu0 0
    %205 = vmatpush1.bf16.msra.mxu0 0
    %206 = vmatprep.subr.bf16.mxu0 0
    %207 = vmatpush1.bf16.msra.mxu0 0
    %208 = vmatprep.subr.bf16.mxu0 0
    %209 = vmatpush1.bf16.msra.mxu0 0
    %210 = vmatprep.subr.bf16.mxu0 0
    %211 = vmatpush1.bf16.msra.mxu0 0
    %212 = vmatprep.subr.bf16.mxu0 0
    %213 = vmatpush1.bf16.msra.mxu0 0
    %214 = vmatprep.subr.bf16.mxu0 0
    %215 = vmatpush1.bf16.msra.mxu0 0
    %216 = vmatprep.subr.bf16.mxu0 0
    %217 = vmatpush1.bf16.msra.mxu0 0
    %218 = vmatprep.subr.bf16.mxu0 0
    %219 = vmatpush1.bf16.msra.mxu0 0
    %220 = vmatprep.subr.bf16.mxu0 0
    %221 = vmatpush1.bf16.msra.mxu0 0
    %222 = vmatprep.subr.bf16.mxu0 0
    %223 = vmatpush1.bf16.msra.mxu0 0
    %224 = vmatprep.mubr.bf16.mxu0 0
    %225 = vmatmul.mubr.bf16.gmra.mrb[0].mxu0 %v169
    %v226 = vpop.f32.mrb[0].mxu0
    %v227 = vadd.f32 0.0, %v226
    %v228 = vpop.f32.mrb[0].mxu0
    %v229 = vpop.f32.mrb[0].mxu0
    %v230 = vadd.f32 0.0, %v229
    %v231 = vpop.f32.mrb[0].mxu0
    %232 = vmatprep.mubr.bf16.mxu0 0
    %233 = vmatmul.mubr.bf16.gmra.mrb[0].mxu0 %v172
    %v234 = vpop.f32.mrb[0].mxu0
    %v235 = vadd.f32 0.0, %v234
    %v236 = vpop.f32.mrb[0].mxu0
    %v237 = vpop.f32.mrb[0].mxu0
    %v238 = vadd.f32 0.0, %v237
    %v239 = vpop.f32.mrb[0].mxu0
    %240 = vmatprep.mubr.bf16.mxu0 0
    %241 = vmatmul.mubr.bf16.gmra.mrb[0].mxu0 %v175
    %v242 = vpop.f32.mrb[0].mxu0
    %v243 = vadd.f32 0.0, %v242
    %v244 = vpop.f32.mrb[0].mxu0
    %v245 = vpop.f32.mrb[0].mxu0
    %v246 = vadd.f32 0.0, %v245
    %v247 = vpop.f32.mrb[0].mxu0
    %248 = vmatprep.mubr.bf16.mxu0 0
    %249 = vmatmul.mubr.bf16.gmra.mrb[0].mxu0 %v178
    %v250 = vpop.f32.mrb[0].mxu0
    %v251 = vadd.f32 0.0, %v250
    %v252 = vpop.f32.mrb[0].mxu0
    %v253 = vpop.f32.mrb[0].mxu0
    %v254 = vadd.f32 0.0, %v253
    %v255 = vpop.f32.mrb[0].mxu0
    %256 = vmatprep.mubr.bf16.mxu0 0
    %257 = vmatmul.mubr.bf16.gmra.mrb[0].mxu0 %v181
    %v258 = vpop.f32.mrb[0].mxu0
    %v259 = vadd.f32 0.0, %v258
    %v260 = vpop.f32.mrb[0].mxu0
    %v261 = vpop.f32.mrb[0].mxu0
    %v262 = vadd.f32 0.0, %v261
    %v263 = vpop.f32.mrb[0].mxu0
    %264 = vmatprep.mubr.bf16.mxu0 0
    %265 = vmatmul.mubr.bf16.gmra.mrb[0].mxu0 %v184
    %v266 = vpop.f32.mrb[0].mxu0
    %v267 = vadd.f32 0.0, %v266
    %v268 = vpop.f32.mrb[0].mxu0
    %v269 = vpop.f32.mrb[0].mxu0
    %v270 = vadd.f32 0.0, %v269
    %v271 = vpop.f32.mrb[0].mxu0
    %272 = vmatprep.mubr.bf16.mxu0 0
    %273 = vmatmul.mubr.bf16.gmra.mrb[0].mxu0 %v187
    %v274 = vpop.f32.mrb[0].mxu0
    %v275 = vadd.f32 0.0, %v274
    %v276 = vpop.f32.mrb[0].mxu0
    %v277 = vpop.f32.mrb[0].mxu0
    %v278 = vadd.f32 0.0, %v277
    %v279 = vpop.f32.mrb[0].mxu0
    %280 = vmatprep.mubr.bf16.mxu0 0
    %281 = vmatmul.mubr.bf16.gmra.mrb[0].mxu0 %v190
    %v282 = vpop.f32.mrb[0].mxu0
    %v283 = vadd.f32 0.0, %v282
    %v284 = vpop.f32.mrb[0].mxu0
    %v285 = vpop.f32.mrb[0].mxu0
    %v286 = vadd.f32 0.0, %v285
    %v287 = vpop.f32.mrb[0].mxu0
    %288 = vdwg.mxu0
    %297 = vrot.lane.b32.xlu0 %v259, 127
    %v298 = vpop.permute.xlu0 %297
    %299 = vrot.lane.b32.xlu0 %v262, 127
    %v300 = vpop.permute.xlu0 %299
    %301 = vrot.lane.b32.xlu0 %v267, 127
    %v302 = vpop.permute.xlu0 %301
    %303 = vrot.lane.b32.xlu0 %v270, 127
    %v304 = vpop.permute.xlu0 %303
    %305 = vrot.lane.b32.xlu0 %v275, 127
    %v306 = vpop.permute.xlu0 %305
    %307 = vrot.lane.b32.xlu0 %v278, 127
    %v308 = vpop.permute.xlu0 %307
    %309 = vrot.lane.b32.xlu0 %v283, 127
    %v310 = vpop.permute.xlu0 %309
    %311 = vrot.lane.b32.xlu0 %v286, 127
    %v312 = vpop.permute.xlu0 %311
    %v321 = vsub.f32 %v227, %v298
    %v322 = vsub.f32 %v230, %v300
    %v323 = vsub.f32 %v235, %v302
    %v324 = vsub.f32 %v238, %v304
    %v325 = vsub.f32 %v243, %v306
    %v326 = vsub.f32 %v246, %v308
    %v327 = vsub.f32 %v251, %v310
    %v328 = vsub.f32 %v254, %v312
    %337 = vrot.lane.b32.xlu0 %v227, 127
    %v338 = vpop.permute.xlu0 %337
    %339 = vrot.lane.b32.xlu0 %v230, 127
    %v340 = vpop.permute.xlu0 %339
    %341 = vrot.lane.b32.xlu0 %v235, 127
    %v342 = vpop.permute.xlu0 %341
    %343 = vrot.lane.b32.xlu0 %v238, 127
    %v344 = vpop.permute.xlu0 %343
    %345 = vrot.lane.b32.xlu0 %v243, 127
    %v346 = vpop.permute.xlu0 %345
    %347 = vrot.lane.b32.xlu0 %v246, 127
    %v348 = vpop.permute.xlu0 %347
    %349 = vrot.lane.b32.xlu0 %v251, 127
    %v350 = vpop.permute.xlu0 %349
    %351 = vrot.lane.b32.xlu0 %v254, 127
    %v352 = vpop.permute.xlu0 %351
    %v361 = vadd.f32 %v259, %v338
    %v362 = vadd.f32 %v262, %v340
    %v363 = vadd.f32 %v267, %v342
    %v364 = vadd.f32 %v270, %v344
    %v365 = vadd.f32 %v275, %v346
    %v366 = vadd.f32 %v278, %v348
    %v367 = vadd.f32 %v283, %v350
    %v368 = vadd.f32 %v286, %v352
    %v369 = vld [vmem:[%s60] sm:$0xff]
    %v370 = vld [vmem:[%s60 + $0x8] sm:$0xff]
    %v371 = vld [vmem:[%s60 + $0x10] sm:$0xff]
    %v372 = vld [vmem:[%s60 + $0x18] sm:$0xff]
    %v373 = vld [vmem:[%s60 + $0x20] sm:$0xff]
    %v374 = vld [vmem:[%s60 + $0x28] sm:$0xff]
    %v375 = vld [vmem:[%s60 + $0x30] sm:$0xff]
    %v376 = vld [vmem:[%s60 + $0x38] sm:$0xff]
    %v377 = vld [vmem:[#allocation2] sm:$0x1]
    %v378 = vmul.f32 %v321, %v369
    %v379 = vmul.f32 %v322, %v370
    %v380 = vmul.f32 %v323, %v371
    %v381 = vmul.f32 %v324, %v372
    %v382 = vmul.f32 %v325, %v373
    %v383 = vmul.f32 %v326, %v374
    %v384 = vmul.f32 %v327, %v375
    %v385 = vmul.f32 %v328, %v376
    %394 = vrot.lane.b32.xlu0 %v369, 127
    %v395 = vpop.permute.xlu0 %394
    %396 = vrot.lane.b32.xlu0 %v370, 127
    %v397 = vpop.permute.xlu0 %396
    %398 = vrot.lane.b32.xlu0 %v371, 127
    %v399 = vpop.permute.xlu0 %398
    %400 = vrot.lane.b32.xlu0 %v372, 127
    %v401 = vpop.permute.xlu0 %400
    %402 = vrot.lane.b32.xlu0 %v373, 127
    %v403 = vpop.permute.xlu0 %402
    %404 = vrot.lane.b32.xlu0 %v374, 127
    %v405 = vpop.permute.xlu0 %404
    %406 = vrot.lane.b32.xlu0 %v375, 127
    %v407 = vpop.permute.xlu0 %406
    %408 = vrot.lane.b32.xlu0 %v376, 127
    %v409 = vpop.permute.xlu0 %408
    %v418 = vmul.f32 %v361, %v395
    %v419 = vmul.f32 %v362, %v397
    %v420 = vmul.f32 %v363, %v399
    %v421 = vmul.f32 %v364, %v401
    %v422 = vmul.f32 %v365, %v403
    %v423 = vmul.f32 %v366, %v405
    %v424 = vmul.f32 %v367, %v407
    %v425 = vmul.f32 %v368, %v409
    %v426 = vadd.f32 %v378, %v418
    %v427 = vadd.f32 %v379, %v419
    %v428 = vadd.f32 %v380, %v420
    %v429 = vadd.f32 %v381, %v421
    %v430 = vadd.f32 %v382, %v422
    %v431 = vadd.f32 %v383, %v423
    %v432 = vadd.f32 %v384, %v424
    %v433 = vadd.f32 %v385, %v425
    %vm434 = vcmask 7168
    %v435 = vsel %vm434, %v426, 0.0
    %v436 = vsel %vm434, %v427, 0.0
    %v437 = vadd.f32 %v435, %v436
    %v438 = vsel %vm434, %v428, 0.0
    %v439 = vadd.f32 %v437, %v438
    %v440 = vsel %vm434, %v429, 0.0
    %v441 = vadd.f32 %v439, %v440
    %v442 = vsel %vm434, %v430, 0.0
    %v443 = vadd.f32 %v441, %v442
    %v444 = vsel %vm434, %v431, 0.0
    %v445 = vadd.f32 %v443, %v444
    %v446 = vsel %vm434, %v432, 0.0
    %v447 = vadd.f32 %v445, %v446
    %v448 = vsel %vm434, %v433, 0.0
    %v449 = vadd.f32 %v447, %v448
    %450 = vadd.xlane.f32.xlu0 %v449
    %v451 = vpop.xlane.xlu0 %450
    %v452 = vrot.slane %v451, 4
    %v453 = vadd.f32 %v451, %v452
    %v454 = vrot.slane %v453, 2
    %v455 = vadd.f32 %v453, %v454
    %v456 = vrot.slane %v455, 1
    %v457 = vadd.f32 %v455, %v456
    %s458 = vtos %v457
    %v459 = vstv %s458
    %v460 = vadd.f32 %v377, %v459
    %vm461 = vcmask 0
    %462 = vst.msk [vmem:[#allocation2] sm:$0x1] %vm461, %v460
    %v463 = vld [vmem:[#allocation3] sm:$0x1]
    %v464 = vmul.f32 %v361, %v369
    %v465 = vmul.f32 %v362, %v370
    %v466 = vmul.f32 %v363, %v371
    %v467 = vmul.f32 %v364, %v372
    %v468 = vmul.f32 %v365, %v373
    %v469 = vmul.f32 %v366, %v374
    %v470 = vmul.f32 %v367, %v375
    %v471 = vmul.f32 %v368, %v376
    %v472 = vmul.f32 %v321, %v395
    %v473 = vmul.f32 %v322, %v397
    %v474 = vmul.f32 %v323, %v399
    %v475 = vmul.f32 %v324, %v401
    %v476 = vmul.f32 %v325, %v403
    %v477 = vmul.f32 %v326, %v405
    %v478 = vmul.f32 %v327, %v407
    %v479 = vmul.f32 %v328, %v409
    %v480 = vsub.f32 %v464, %v472
    %v481 = vsub.f32 %v465, %v473
    %v482 = vsub.f32 %v466, %v474
    %v483 = vsub.f32 %v467, %v475
    %v484 = vsub.f32 %v468, %v476
    %v485 = vsub.f32 %v469, %v477
    %v486 = vsub.f32 %v470, %v478
    %v487 = vsub.f32 %v471, %v479
    %v488 = vsel %vm434, %v480, 0.0
    %v489 = vsel %vm434, %v481, 0.0
    %v490 = vadd.f32 %v488, %v489
    %v491 = vsel %vm434, %v482, 0.0
    %v492 = vadd.f32 %v490, %v491
    %v493 = vsel %vm434, %v483, 0.0
    %v494 = vadd.f32 %v492, %v493
    %v495 = vsel %vm434, %v484, 0.0
    %v496 = vadd.f32 %v494, %v495
    %v497 = vsel %vm434, %v485, 0.0
    %v498 = vadd.f32 %v496, %v497
    %v499 = vsel %vm434, %v486, 0.0
    %v500 = vadd.f32 %v498, %v499
    %v501 = vsel %vm434, %v487, 0.0
    %v502 = vadd.f32 %v500, %v501
    %503 = vadd.xlane.f32.xlu0 %v502
    %v504 = vpop.xlane.xlu0 %503
    %v505 = vrot.slane %v504, 4
    %v506 = vadd.f32 %v504, %v505
    %v507 = vrot.slane %v506, 2
    %v508 = vadd.f32 %v506, %v507
    %v509 = vrot.slane %v508, 1
    %v510 = vadd.f32 %v508, %v509
    %s511 = vtos %v510
    %v512 = vstv %s511
    %v513 = vadd.f32 %v463, %v512
    %514 = vst.msk [vmem:[#allocation3] sm:$0x1] %vm461, %v513
    // Predicated region
    $region34: #{tpu_custom_call.1} parent=1 // pred_check
      %p515 = pneg %p72
    $region35: #{tpu_custom_call.1} parent=1 // pred_check_branch
      %517 = sbr.rel (%p515) target = $region37
    $region36: #{tpu_custom_call.1} parent=1 // pred_region
      %v518 = vld [vmem:[%s0] sm:$0xff]
      %v519 = vld [vmem:[%s1] sm:$0xff]
      %v520 = vld [vmem:[%s2] sm:$0xff]
      %v521 = vld [vmem:[%s3] sm:$0xff]
      %v522 = vmul.f32 %v520, %v518
      %v523 = vmul.f32 %v521, %v519
      %v524 = vsub.f32 %v522, %v523
      %vm525 = vcmask 64512
      %v526 = vsel %vm525, %v524, 0.0
      %527 = vadd.xlane.f32.xlu0 %v526
      %v528 = vpop.xlane.xlu0 %527
      %v529 = vrot.slane %v528, 4
      %v530 = vadd.f32 %v528, %v529
      %v531 = vrot.slane %v530, 2
      %v532 = vadd.f32 %v530, %v531
      %v533 = vrot.slane %v532, 1
      %v534 = vadd.f32 %v532, %v533
      %s535 = vtos %v534
      %v536 = vmul.f32 %v520, %v519
      %v537 = vmul.f32 %v521, %v518
      %v538 = vadd.f32 %v536, %v537
      %v539 = vsel %vm525, %v538, 0.0
      %540 = vadd.xlane.f32.xlu0 %v539
      %v541 = vpop.xlane.xlu0 %540
      %v542 = vrot.slane %v541, 4
      %v543 = vadd.f32 %v541, %v542
      %v544 = vrot.slane %v543, 2
      %v545 = vadd.f32 %v543, %v544
      %v546 = vrot.slane %v545, 1
      %v547 = vadd.f32 %v545, %v546
      %s548 = vtos %v547
      %v549 = vlaneseq
      %v550 = vshrl.u32 %v549, 7
      %v551 = vlaneseq
      %v552 = vand.u32 %v551, 127
      %vm553 = vcmp.eq.s32.totalorder %v550, %v552
      %v554 = vsel %vm553, 1.0, 0.0
      %v555 = vsub.f32 %v554, %v518
      %v556 = vmul.f32 %v555, %v555
      %v557 = vmul.f32 %v519, %v519
      %v558 = vadd.f32 %v556, %v557
      %v559 = vrsqrt.pop %v558
      %v560 = vmul.f32 %v558, %v559
      %vm561 = vcmp.eq.f32.partialorder %v558, inf
      %v562 = vsel %vm561, %v558, %v560
      %vm563 = vcmp.eq.f32.partialorder %v558, 0.0
      %v564 = vand.u32 %v558, 2147483648
      %v565 = vsel %vm563, %v564, %v562
      %v566 = vsel %vm525, %v565, 0.0
      %567 = vadd.xlane.f32.xlu0 %v566
      %v568 = vpop.xlane.xlu0 %567
      %v569 = vrot.slane %v568, 4
      %v570 = vadd.f32 %v568, %v569
      %v571 = vrot.slane %v570, 2
      %v572 = vadd.f32 %v570, %v571
      %v573 = vrot.slane %v572, 1
      %v574 = vadd.f32 %v572, %v573
      %s575 = vtos %v574
      %v576 = vstv %s575
      %v577 = vmul.f32 %v576, 0.015625
      %v578 = vld [vmem:[#allocation2] sm:$0x1]
      %vm579 = vcmp.eq.s32.totalorder %v550, 0
      %vm580 = vcmp.eq.s32.totalorder %v552, 0
      %vm581 = vmand %vm579, %vm580
      %v582 = vsel %vm581, 1.0, 0.0
      %v584 = vlaneseq
      %v585 = vshrl.u32 %v584, 7
      %v586 = vsub.s32 0, %v585
      %v587 = vrot.slane %v578, %v586
      %588 = vset.pattern.permute.xlu0 0
      %589 = vperm.xlu0 %588, %v587
      %v590 = vpop.permute.xlu0 %589
      %v592 = vmul.f32 %v582, %v590
      %v593 = vld [vmem:[#allocation3] sm:$0x1]
      %vm594 = vcmp.eq.s32.totalorder %v552, 1
      %vm595 = vmand %vm579, %vm594
      %v596 = vsel %vm595, 1.0, 0.0
      %v598 = vlaneseq
      %v599 = vshrl.u32 %v598, 7
      %v600 = vsub.s32 0, %v599
      %v601 = vrot.slane %v593, %v600
      %602 = vset.pattern.permute.xlu0 0
      %603 = vperm.xlu0 %602, %v601
      %v604 = vpop.permute.xlu0 %603
      %v606 = vmul.f32 %v596, %v604
      %v607 = vadd.f32 %v592, %v606
      %vm608 = vcmp.eq.s32.totalorder %v552, 2
      %vm609 = vmand %vm579, %vm608
      %v610 = vsel %vm609, 1.0, 0.0
      %v611 = vstv %s535
      %v612 = vmul.f32 %v610, %v611
      %v613 = vadd.f32 %v607, %v612
      %vm614 = vcmp.eq.s32.totalorder %v552, 3
      %vm615 = vmand %vm579, %vm614
      %v616 = vsel %vm615, 1.0, 0.0
      %v617 = vstv %s548
      %v618 = vmul.f32 %v616, %v617
      %v619 = vadd.f32 %v613, %v618
      %vm620 = vcmp.eq.s32.totalorder %v552, 4
      %vm621 = vmand %vm579, %vm620
      %v622 = vsel %vm621, 1.0, 0.0
      %v623 = vmul.f32 %v622, %v577
      %v624 = vadd.f32 %v619, %v623
      %625 = vst [vmem:[#allocation4] sm:$0xff] %v624
    $region37: #{tpu_custom_call.1} parent=1 // pred_fallthru
      _
    // Predicated region
    $region38: #{tpu_custom_call.1} parent=1 // pred_check
      _
    $region39: #{tpu_custom_call.1} parent=1 // pred_check_branch
      %627 = sbr.rel (0) target = $region41
    $region40: #{tpu_custom_call.1} parent=1 // pred_region
      %s629 = ssub.s32 128, 128
      %630 = vsyncadd [#allocation5], %s629
      %s632 = sshll.u32 [#allocation4], 4
      %s633 = int_to_ptr.vmem [resolvable:$true] %s632
      %635 = dma.vmem_to_hbm [thread:$0]  %s633, 128, %s7, [#allocation5]
    $region41: #{tpu_custom_call.1} parent=1 // pred_fallthru
      _
    // Predicated region
    $region42: #{tpu_custom_call.1} parent=1 // pred_check
      _
    $region43: #{tpu_custom_call.1} parent=1 // pred_check_branch
      %637 = sbr.rel (0) target = $region45
    $region44: #{tpu_custom_call.1} parent=1 // pred_region
      %638 = dma.done [#allocation5], 128
    $region45: #{tpu_custom_call.1} parent=1 // pred_fallthru
      _
    %639 = vsyncpa [#allocation5], 1

</llo_original>
